<compile_context>
chip_gen: v7x
topology: tpu7x:2x2x1
jax: 0.10.0
libtpu: 0.0.40
codegen_flags: <defaults>
</compile_context>

<pallas_src>
import math

import jax
import jax.numpy as jnp
from jax.experimental import pallas as pl
from jax.experimental.pallas import tpu as pltpu


# ---------------------------------------------------------------------------
# Kernel: canonical tiled matmul with f32 accumulation
# ---------------------------------------------------------------------------
def _matmul_kernel(a_ref, b_ref, o_ref, acc_ref):
    """Grid = (i: out row tiles, j: out col tiles, k: reduction tiles).

    a_ref   : (tm, tk)
    b_ref   : (tk, tn)
    o_ref   : (tm, tn)       output tile (written once, on the last k step)
    acc_ref : (tm, tn) f32   VMEM accumulator, persistent across k
    """
    k = pl.program_id(2)

    @pl.when(k == 0)
    def _():
        acc_ref[...] = jnp.zeros_like(acc_ref)

    acc_ref[...] += jnp.dot(a_ref[...], b_ref[...],
                            preferred_element_type=jnp.float32)

    @pl.when(k == pl.num_programs(2) - 1)
    def _():
        o_ref[...] = acc_ref[...].astype(o_ref.dtype)


# ---------------------------------------------------------------------------
# Helpers
# ---------------------------------------------------------------------------
def _round_up(x, m):
    return ((x + m - 1) // m) * m


def _pick_tile(dim_padded, max_tile=512, unit=128):
    """Largest multiple of `unit` that divides `dim_padded` and is <= max_tile."""
    best = unit
    t = unit
    while t <= max_tile:
        if dim_padded % t == 0:
            best = t
        t += unit
    return best


def _pad2d(a, rows, cols):
    r, c = a.shape
    if r == rows and c == cols:
        return a
    return jnp.pad(a, ((0, rows - r), (0, cols - c)))


def _matmul_padded(a, b, out_dtype):
    """a @ b for 128-aligned padded operands, tiled Pallas matmul."""
    m, ka = a.shape
    kb, n = b.shape
    assert ka == kb, (ka, kb)

    tm = _pick_tile(m)
    tk = _pick_tile(ka)
    tn = _pick_tile(n)
    grid = (m // tm, n // tn, ka // tk)

    a_bytes = a.size * jnp.dtype(a.dtype).itemsize
    b_bytes = b.size * jnp.dtype(b.dtype).itemsize
    o_bytes = m * n * jnp.dtype(out_dtype).itemsize
    cost = pl.CostEstimate(
        flops=2 * m * n * ka,
        bytes_accessed=a_bytes + b_bytes + o_bytes,
        transcendentals=0,
    )

    return pl.pallas_call(
        _matmul_kernel,
        out_shape=jax.ShapeDtypeStruct((m, n), out_dtype),
        grid_spec=pltpu.PrefetchScalarGridSpec(
            num_scalar_prefetch=0,
            grid=grid,
            in_specs=[
                pl.BlockSpec((tm, tk), lambda i, j, k: (i, k)),
                pl.BlockSpec((tk, tn), lambda i, j, k: (k, j)),
            ],
            out_specs=pl.BlockSpec((tm, tn), lambda i, j, k: (i, j)),
            scratch_shapes=[pltpu.VMEM((tm, tn), jnp.float32)],
        ),
        compiler_params=pltpu.CompilerParams(
            dimension_semantics=("parallel", "parallel", "arbitrary"),
            vmem_limit_bytes=32 * 1024 * 1024,
        ),
        cost_estimate=cost,
    )(a, b)


# ---------------------------------------------------------------------------
# GraphConvolution forward
# ---------------------------------------------------------------------------
def graph_convolution(x, weight, adj, *, compute_dtype=None):
    """output = adj @ (x @ weight) via two tiled Pallas TPU matmuls.

    compute_dtype: optionally cast inputs (e.g. jnp.bfloat16 on v6e/v7x) —
    both matmuls still accumulate in f32; the final output keeps x's dtype.
    """
    n, d_in = x.shape
    d_in_w, d_out = weight.shape
    assert d_in == d_in_w, (d_in, d_in_w)
    assert adj.shape == (n, n), adj.shape

    out_dtype = x.dtype
    if compute_dtype is not None:
        x = x.astype(compute_dtype)
        weight = weight.astype(compute_dtype)
        adj = adj.astype(compute_dtype)

    # Pad every dim to a multiple of 128: lane-dense stores, full MXU tiles.
    # Zero padding is exact for this op (extra rows/cols contribute zeros).
    n_p = _round_up(n, 128)
    d_in_p = _round_up(d_in, 128)
    d_out_p = _round_up(d_out, 128)

    x_p = _pad2d(x, n_p, d_in_p)
    w_p = _pad2d(weight, d_in_p, d_out_p)
    adj_p = _pad2d(adj, n_p, n_p)

    # support in the compute dtype keeps the second matmul on the fast MXU
    # path (bf16 x bf16 -> f32 accumulate) when compute_dtype=bf16.
    support_p = _matmul_padded(x_p, w_p, x_p.dtype)       # (n_p, d_out_p)
    out_p = _matmul_padded(adj_p, support_p, out_dtype)   # (n_p, d_out_p)

    return out_p[:n, :d_out]


def xavier_uniform(key, fan_in, fan_out, dtype=jnp.float32):
    # Matches nn.init.xavier_uniform_ (gain=1): U(-a, a), a = sqrt(6/(fan_in+fan_out))
    bound = math.sqrt(6.0 / (fan_in + fan_out))
    return jax.random.uniform(
        key, (fan_in, fan_out), dtype=dtype, minval=-bound, maxval=bound
    )


# ---------------------------------------------------------------------------
# Demo / self-check
# ---------------------------------------------------------------------------
if __name__ == "__main__":
    # Small, forward-consistent shapes: N nodes, input_dim -> output_dim.
    N, INPUT_DIM, OUTPUT_DIM = 8, 32, 16

    key = jax.random.PRNGKey(0)
    k_w, k_x, k_adj = jax.random.split(key, 3)

    weight = xavier_uniform(k_w, INPUT_DIM, OUTPUT_DIM)            # (D_in, D_out)
    x = jax.random.normal(k_x, (N, INPUT_DIM), dtype=jnp.float32)  # (N, D_in)
    # Symmetric adjacency (dense), deterministic.
    a = jax.random.uniform(k_adj, (N, N), dtype=jnp.float32)
    adj = (a + a.T) * 0.5

    gcn = jax.jit(graph_convolution)
    out = gcn(x, weight, adj)
    out = jax.block_until_ready(out)

    # Cross-check against plain-JAX reference.
    ref = adj @ (x @ weight)
    assert out.shape == (N, OUTPUT_DIM), out.shape
    assert jnp.allclose(out, ref, atol=1e-4, rtol=1e-4)

    print("KERNEL_OK")
</pallas_src>

<mosaic_0001>
module attributes {stable_mosaic.version = 11 : i64} {
  func.func @_matmul_kernel(%arg0: i32, %arg1: i32, %arg2: i32, %arg3: memref<128x128xf32, #tpu.memory_space<vmem>>, %arg4: memref<128x128xf32, #tpu.memory_space<vmem>>, %arg5: memref<128x128xf32, #tpu.memory_space<vmem>>, %arg6: memref<128x128xf32, #tpu.memory_space<vmem>>) attributes {dimension_semantics = [#tpu.dimension_semantics<parallel>, #tpu.dimension_semantics<parallel>, #tpu.dimension_semantics<arbitrary>], iteration_bounds = array<i64: 1, 1, 1>, scalar_prefetch = 0 : i64, scratch_operands = 1 : i64, tpu.core_type = #tpu.core_type<tc>, window_params = [{transform_indices = @transform_0, window_bounds = array<i64: 128, 128>}, {transform_indices = @transform_1, window_bounds = array<i64: 128, 128>}, {transform_indices = @transform_2, window_bounds = array<i64: 128, 128>}]} {
    %c0_i32 = arith.constant 0 : i32
    %0 = arith.cmpi eq, %arg2, %c0_i32 : i32
    %1 = arith.extui %0 : i1 to i32
    %c0_i32_0 = arith.constant 0 : i32
    %2 = arith.cmpi ne, %1, %c0_i32_0 : i32
    scf.if %2 {
      %cst_10 = arith.constant 0.000000e+00 : f32
      %12 = vector.broadcast %cst_10 : f32 to vector<128x128xf32>
      %c0_11 = arith.constant 0 : index
      %c0_12 = arith.constant 0 : index
      %13 = vector.load %arg6[%c0_11, %c0_12] : memref<128x128xf32, #tpu.memory_space<vmem>>, vector<128x128xf32>
      tpu.vector_store %arg6[%c0_11, %c0_12], %12 {strides = array<i32>} : memref<128x128xf32, #tpu.memory_space<vmem>>, vector<128x128xf32>,
    } else {
    }
    %c0 = arith.constant 0 : index
    %c0_1 = arith.constant 0 : index
    %3 = vector.load %arg6[%c0, %c0_1] : memref<128x128xf32, #tpu.memory_space<vmem>>, vector<128x128xf32>
    %c0_2 = arith.constant 0 : index
    %c0_3 = arith.constant 0 : index
    %4 = vector.load %arg3[%c0_2, %c0_3] : memref<128x128xf32, #tpu.memory_space<vmem>>, vector<128x128xf32>
    %c0_4 = arith.constant 0 : index
    %c0_5 = arith.constant 0 : index
    %5 = vector.load %arg4[%c0_4, %c0_5] : memref<128x128xf32, #tpu.memory_space<vmem>>, vector<128x128xf32>
    %cst = arith.constant dense<0.000000e+00> : vector<128x128xf32>
    %6 = tpu.matmul %4, %5, %cst {dimension_numbers = #tpu.dot_dimension_numbers<[1], [0], [0], [1], [0, 0, 1, 1], [], []>} : vector<128x128xf32>, vector<128x128xf32>, vector<128x128xf32> -> vector<128x128xf32>
    %7 = arith.addf %3, %6 : vector<128x128xf32>
    %c0_6 = arith.constant 0 : index
    %c0_7 = arith.constant 0 : index
    %8 = vector.load %arg6[%c0_6, %c0_7] : memref<128x128xf32, #tpu.memory_space<vmem>>, vector<128x128xf32>
    tpu.vector_store %arg6[%c0_6, %c0_7], %7 {strides = array<i32>} : memref<128x128xf32, #tpu.memory_space<vmem>>, vector<128x128xf32>,
    %c0_i32_8 = arith.constant 0 : i32
    %9 = arith.cmpi eq, %arg2, %c0_i32_8 : i32
    %10 = arith.extui %9 : i1 to i32
    %c0_i32_9 = arith.constant 0 : i32
    %11 = arith.cmpi ne, %10, %c0_i32_9 : i32
    scf.if %11 {
      %c0_10 = arith.constant 0 : index
      %c0_11 = arith.constant 0 : index
      %12 = vector.load %arg6[%c0_10, %c0_11] : memref<128x128xf32, #tpu.memory_space<vmem>>, vector<128x128xf32>
      %c0_12 = arith.constant 0 : index
      %c0_13 = arith.constant 0 : index
      %13 = vector.load %arg5[%c0_12, %c0_13] : memref<128x128xf32, #tpu.memory_space<vmem>>, vector<128x128xf32>
      tpu.vector_store %arg5[%c0_12, %c0_13], %12 {strides = array<i32>} : memref<128x128xf32, #tpu.memory_space<vmem>>, vector<128x128xf32>,
    } else {
    }
    return
  }
  func.func @transform_0(%arg0: i32, %arg1: i32, %arg2: i32) -> (i32, i32) {
    %c0_i32 = arith.constant 0 : i32
    return %arg0, %arg2 : i32, i32
  }
  func.func @transform_1(%arg0: i32, %arg1: i32, %arg2: i32) -> (i32, i32) {
    %c0_i32 = arith.constant 0 : i32
    return %arg2, %arg1 : i32, i32
  }
  func.func @transform_2(%arg0: i32, %arg1: i32, %arg2: i32) -> (i32, i32) {
    %c0_i32 = arith.constant 0 : i32
    return %arg0, %arg1 : i32, i32
  }
}

</mosaic_0001>

<llo_original>
// kernel: graph_convolution.2
$region0: #{graph_convolution.2}
  #allocation0 [shape = 'u32[]', space=smem, size = 0x4, offset = 0x4, fixed_abs, tag = 'smem constant byte address 0x4 - core index']
  #allocation1 [shape = 'u32[144,128]{1,0:T(1,128)}', space=vmem, size = 0x12000, scoped, tag = 'internal scratch']
  #allocation2 [shape = 'f32[128,128]{1,0:T(8,128)}', space=vmem, size = 0x10000, scoped, tag = 'scratch operand']
  %s0 = inlined_call_operand.vmem [shape: f32[128,128], index: 0, kind: input, shape index: {}]
  %s1 = inlined_call_operand.vmem [shape: f32[128,128], index: 1, kind: input, shape index: {}]
  %s2 = inlined_call_operand.vmem [shape: f32[128,128], index: 2, kind: output, shape index: {}]
  %s3 = sld [smem:[#allocation0]]
  $region26: #{graph_convolution.2} parent=0
    _
  %s5 = ssub.s32 1, %s3
  %s6 = scalar_select 0, %s5, %s3
  // Predicated region
  $region2: #{graph_convolution.2} parent=0 // pred_check
    _
  $region3: #{graph_convolution.2} parent=0 // pred_check_branch
    %8 = sbr.rel (0) target = $region5
  $region4: #{graph_convolution.2} parent=0 // pred_region
    _
  $region5: #{graph_convolution.2} parent=0 // pred_fallthru
    _
  // Predicated region
  $region6: #{graph_convolution.2} parent=0 // pred_check
    _
  $region7: #{graph_convolution.2} parent=0 // pred_check_branch
    %10 = sbr.rel (0) target = $region9
  $region8: #{graph_convolution.2} parent=0 // pred_region
    _
  $region9: #{graph_convolution.2} parent=0 // pred_fallthru
    _
  %p11 = scmp.eq.s32.totalorder 0, 0
  // Predicated region
  $region10: #{graph_convolution.2} parent=0 // pred_check
    %p12 = pneg %p11
  $region11: #{graph_convolution.2} parent=0 // pred_check_branch
    %14 = sbr.rel (%p12) target = $region13
  $region12: #{graph_convolution.2} parent=0 // pred_region
    %15 = vst [vmem:[#allocation2] sm:$0xff] 0.0
    %16 = vst [vmem:[#allocation2 + $0x8] sm:$0xff] 0.0
    %17 = vst [vmem:[#allocation2 + $0x10] sm:$0xff] 0.0
    %18 = vst [vmem:[#allocation2 + $0x18] sm:$0xff] 0.0
    %19 = vst [vmem:[#allocation2 + $0x20] sm:$0xff] 0.0
    %20 = vst [vmem:[#allocation2 + $0x28] sm:$0xff] 0.0
    %21 = vst [vmem:[#allocation2 + $0x30] sm:$0xff] 0.0
    %22 = vst [vmem:[#allocation2 + $0x38] sm:$0xff] 0.0
    %23 = vst [vmem:[#allocation2 + $0x40] sm:$0xff] 0.0
    %24 = vst [vmem:[#allocation2 + $0x48] sm:$0xff] 0.0
    %25 = vst [vmem:[#allocation2 + $0x50] sm:$0xff] 0.0
    %26 = vst [vmem:[#allocation2 + $0x58] sm:$0xff] 0.0
    %27 = vst [vmem:[#allocation2 + $0x60] sm:$0xff] 0.0
    %28 = vst [vmem:[#allocation2 + $0x68] sm:$0xff] 0.0
    %29 = vst [vmem:[#allocation2 + $0x70] sm:$0xff] 0.0
    %30 = vst [vmem:[#allocation2 + $0x78] sm:$0xff] 0.0
  $region13: #{graph_convolution.2} parent=0 // pred_fallthru
    _
  %v31 = vld [vmem:[#allocation2] sm:$0xff]
  %v32 = vld [vmem:[#allocation2 + $0x8] sm:$0xff]
  %v33 = vld [vmem:[#allocation2 + $0x10] sm:$0xff]
  %v34 = vld [vmem:[#allocation2 + $0x18] sm:$0xff]
  %v35 = vld [vmem:[#allocation2 + $0x20] sm:$0xff]
  %v36 = vld [vmem:[#allocation2 + $0x28] sm:$0xff]
  %v37 = vld [vmem:[#allocation2 + $0x30] sm:$0xff]
  %v38 = vld [vmem:[#allocation2 + $0x38] sm:$0xff]
  %v39 = vld [vmem:[#allocation2 + $0x40] sm:$0xff]
  %v40 = vld [vmem:[#allocation2 + $0x48] sm:$0xff]
  %v41 = vld [vmem:[#allocation2 + $0x50] sm:$0xff]
  %v42 = vld [vmem:[#allocation2 + $0x58] sm:$0xff]
  %v43 = vld [vmem:[#allocation2 + $0x60] sm:$0xff]
  %v44 = vld [vmem:[#allocation2 + $0x68] sm:$0xff]
  %v45 = vld [vmem:[#allocation2 + $0x70] sm:$0xff]
  %v46 = vld [vmem:[#allocation2 + $0x78] sm:$0xff]
  %v47 = vld [vmem:[%s0] sm:$0xff]
  %v48 = vld [vmem:[%s0 + $0x8] sm:$0xff]
  %v49 = vld [vmem:[%s0 + $0x10] sm:$0xff]
  %v50 = vld [vmem:[%s0 + $0x18] sm:$0xff]
  %v51 = vld [vmem:[%s0 + $0x20] sm:$0xff]
  %v52 = vld [vmem:[%s0 + $0x28] sm:$0xff]
  %v53 = vld [vmem:[%s0 + $0x30] sm:$0xff]
  %v54 = vld [vmem:[%s0 + $0x38] sm:$0xff]
  %v55 = vld [vmem:[%s0 + $0x40] sm:$0xff]
  %v56 = vld [vmem:[%s0 + $0x48] sm:$0xff]
  %v57 = vld [vmem:[%s0 + $0x50] sm:$0xff]
  %v58 = vld [vmem:[%s0 + $0x58] sm:$0xff]
  %v59 = vld [vmem:[%s0 + $0x60] sm:$0xff]
  %v60 = vld [vmem:[%s0 + $0x68] sm:$0xff]
  %v61 = vld [vmem:[%s0 + $0x70] sm:$0xff]
  %v62 = vld [vmem:[%s0 + $0x78] sm:$0xff]
  %v63 = vld [vmem:[%s1] sm:$0xff]
  %v64 = vld [vmem:[%s1 + $0x8] sm:$0xff]
  %v65 = vld [vmem:[%s1 + $0x10] sm:$0xff]
  %v66 = vld [vmem:[%s1 + $0x18] sm:$0xff]
  %v67 = vld [vmem:[%s1 + $0x20] sm:$0xff]
  %v68 = vld [vmem:[%s1 + $0x28] sm:$0xff]
  %v69 = vld [vmem:[%s1 + $0x30] sm:$0xff]
  %v70 = vld [vmem:[%s1 + $0x38] sm:$0xff]
  %v71 = vld [vmem:[%s1 + $0x40] sm:$0xff]
  %v72 = vld [vmem:[%s1 + $0x48] sm:$0xff]
  %v73 = vld [vmem:[%s1 + $0x50] sm:$0xff]
  %v74 = vld [vmem:[%s1 + $0x58] sm:$0xff]
  %v75 = vld [vmem:[%s1 + $0x60] sm:$0xff]
  %v76 = vld [vmem:[%s1 + $0x68] sm:$0xff]
  %v77 = vld [vmem:[%s1 + $0x70] sm:$0xff]
  %v78 = vld [vmem:[%s1 + $0x78] sm:$0xff]
  %79 = vmatprep.subr.mxu0 0.0
  %80 = vmatpush1.msra.mxu0 %v63
  %81 = vmatprep.subr.mxu0 0.0
  %82 = vmatpush1.msra.mxu0 %v64
  %83 = vmatprep.subr.mxu0 0.0
  %84 = vmatpush1.msra.mxu0 %v65
  %85 = vmatprep.subr.mxu0 0.0
  %86 = vmatpush1.msra.mxu0 %v66
  %87 = vmatprep.subr.mxu0 0.0
  %88 = vmatpush1.msra.mxu0 %v67
  %89 = vmatprep.subr.mxu0 0.0
  %90 = vmatpush1.msra.mxu0 %v68
  %91 = vmatprep.subr.mxu0 0.0
  %92 = vmatpush1.msra.mxu0 %v69
  %93 = vmatprep.subr.mxu0 0.0
  %94 = vmatpush1.msra.mxu0 %v70
  %95 = vmatprep.subr.mxu0 0.0
  %96 = vmatpush1.msra.mxu0 %v71
  %97 = vmatprep.subr.mxu0 0.0
  %98 = vmatpush1.msra.mxu0 %v72
  %99 = vmatprep.subr.mxu0 0.0
  %100 = vmatpush1.msra.mxu0 %v73
  %101 = vmatprep.subr.mxu0 0.0
  %102 = vmatpush1.msra.mxu0 %v74
  %103 = vmatprep.subr.mxu0 0.0
  %104 = vmatpush1.msra.mxu0 %v75
  %105 = vmatprep.subr.mxu0 0.0
  %106 = vmatpush1.msra.mxu0 %v76
  %107 = vmatprep.subr.mxu0 0.0
  %108 = vmatpush1.msra.mxu0 %v77
  %109 = vmatprep.subr.mxu0 0.0
  %110 = vmatpush1.msra.mxu0 %v78
  %111 = vmatprep.subr.mxu0 0.0
  %112 = vmatpush1.msra.mxu0 0.0
  %113 = vmatprep.subr.mxu0 0.0
  %114 = vmatpush1.msra.mxu0 0.0
  %115 = vmatprep.subr.mxu0 0.0
  %116 = vmatpush1.msra.mxu0 0.0
  %117 = vmatprep.subr.mxu0 0.0
  %118 = vmatpush1.msra.mxu0 0.0
  %119 = vmatprep.subr.mxu0 0.0
  %120 = vmatpush1.msra.mxu0 0.0
  %121 = vmatprep.subr.mxu0 0.0
  %122 = vmatpush1.msra.mxu0 0.0
  %123 = vmatprep.subr.mxu0 0.0
  %124 = vmatpush1.msra.mxu0 0.0
  %125 = vmatprep.subr.mxu0 0.0
  %126 = vmatpush1.msra.mxu0 0.0
  %127 = vmatprep.subr.mxu0 0.0
  %128 = vmatpush1.msra.mxu0 0.0
  %129 = vmatprep.subr.mxu0 0.0
  %130 = vmatpush1.msra.mxu0 0.0
  %131 = vmatprep.subr.mxu0 0.0
  %132 = vmatpush1.msra.mxu0 0.0
  %133 = vmatprep.subr.mxu0 0.0
  %134 = vmatpush1.msra.mxu0 0.0
  %135 = vmatprep.subr.mxu0 0.0
  %136 = vmatpush1.msra.mxu0 0.0
  %137 = vmatprep.subr.mxu0 0.0
  %138 = vmatpush1.msra.mxu0 0.0
  %139 = vmatprep.subr.mxu0 0.0
  %140 = vmatpush1.msra.mxu0 0.0
  %141 = vmatprep.subr.mxu0 0.0
  %142 = vmatpush1.msra.mxu0 0.0
  %143 = vmatprep.mubr.f32.mxu0 0.0
  %144 = vmatmul.mubr.f32.gmra.mrb[0].mxu0 %v47
  %v145 = vpop.f32.mrb[0].mxu0
  %v146 = vadd.f32 0.0, %v145
  %v147 = vpop.f32.mrb[0].mxu0
  %148 = vmatprep.mubr.f32.mxu0 0.0
  %149 = vmatmul.mubr.f32.gmra.mrb[0].mxu0 %v48
  %v150 = vpop.f32.mrb[0].mxu0
  %v151 = vadd.f32 0.0, %v150
  %v152 = vpop.f32.mrb[0].mxu0
  %153 = vmatprep.mubr.f32.mxu0 0.0
  %154 = vmatmul.mubr.f32.gmra.mrb[0].mxu0 %v49
  %v155 = vpop.f32.mrb[0].mxu0
  %v156 = vadd.f32 0.0, %v155
  %v157 = vpop.f32.mrb[0].mxu0
  %158 = vmatprep.mubr.f32.mxu0 0.0
  %159 = vmatmul.mubr.f32.gmra.mrb[0].mxu0 %v50
  %v160 = vpop.f32.mrb[0].mxu0
  %v161 = vadd.f32 0.0, %v160
  %v162 = vpop.f32.mrb[0].mxu0
  %163 = vmatprep.mubr.f32.mxu0 0.0
  %164 = vmatmul.mubr.f32.gmra.mrb[0].mxu0 %v51
  %v165 = vpop.f32.mrb[0].mxu0
  %v166 = vadd.f32 0.0, %v165
  %v167 = vpop.f32.mrb[0].mxu0
  %168 = vmatprep.mubr.f32.mxu0 0.0
  %169 = vmatmul.mubr.f32.gmra.mrb[0].mxu0 %v52
  %v170 = vpop.f32.mrb[0].mxu0
  %v171 = vadd.f32 0.0, %v170
  %v172 = vpop.f32.mrb[0].mxu0
  %173 = vmatprep.mubr.f32.mxu0 0.0
  %174 = vmatmul.mubr.f32.gmra.mrb[0].mxu0 %v53
  %v175 = vpop.f32.mrb[0].mxu0
  %v176 = vadd.f32 0.0, %v175
  %v177 = vpop.f32.mrb[0].mxu0
  %178 = vmatprep.mubr.f32.mxu0 0.0
  %179 = vmatmul.mubr.f32.gmra.mrb[0].mxu0 %v54
  %v180 = vpop.f32.mrb[0].mxu0
  %v181 = vadd.f32 0.0, %v180
  %v182 = vpop.f32.mrb[0].mxu0
  %183 = vmatprep.mubr.f32.mxu0 0.0
  %184 = vmatmul.mubr.f32.gmra.mrb[0].mxu0 %v55
  %v185 = vpop.f32.mrb[0].mxu0
  %v186 = vadd.f32 0.0, %v185
  %v187 = vpop.f32.mrb[0].mxu0
  %188 = vmatprep.mubr.f32.mxu0 0.0
  %189 = vmatmul.mubr.f32.gmra.mrb[0].mxu0 %v56
  %v190 = vpop.f32.mrb[0].mxu0
  %v191 = vadd.f32 0.0, %v190
  %v192 = vpop.f32.mrb[0].mxu0
  %193 = vmatprep.mubr.f32.mxu0 0.0
  %194 = vmatmul.mubr.f32.gmra.mrb[0].mxu0 %v57
  %v195 = vpop.f32.mrb[0].mxu0
  %v196 = vadd.f32 0.0, %v195
  %v197 = vpop.f32.mrb[0].mxu0
  %198 = vmatprep.mubr.f32.mxu0 0.0
  %199 = vmatmul.mubr.f32.gmra.mrb[0].mxu0 %v58
  %v200 = vpop.f32.mrb[0].mxu0
  %v201 = vadd.f32 0.0, %v200
  %v202 = vpop.f32.mrb[0].mxu0
  %203 = vmatprep.mubr.f32.mxu0 0.0
  %204 = vmatmul.mubr.f32.gmra.mrb[0].mxu0 %v59
  %v205 = vpop.f32.mrb[0].mxu0
  %v206 = vadd.f32 0.0, %v205
  %v207 = vpop.f32.mrb[0].mxu0
  %208 = vmatprep.mubr.f32.mxu0 0.0
  %209 = vmatmul.mubr.f32.gmra.mrb[0].mxu0 %v60
  %v210 = vpop.f32.mrb[0].mxu0
  %v211 = vadd.f32 0.0, %v210
  %v212 = vpop.f32.mrb[0].mxu0
  %213 = vmatprep.mubr.f32.mxu0 0.0
  %214 = vmatmul.mubr.f32.gmra.mrb[0].mxu0 %v61
  %v215 = vpop.f32.mrb[0].mxu0
  %v216 = vadd.f32 0.0, %v215
  %v217 = vpop.f32.mrb[0].mxu0
  %218 = vmatprep.mubr.f32.mxu0 0.0
  %219 = vmatmul.mubr.f32.gmra.mrb[0].mxu0 %v62
  %v220 = vpop.f32.mrb[0].mxu0
  %v221 = vadd.f32 0.0, %v220
  %v222 = vpop.f32.mrb[0].mxu0
  %223 = vdwg.mxu0
  %v224 = vadd.f32 %v31, %v146
  %v225 = vadd.f32 %v32, %v151
  %v226 = vadd.f32 %v33, %v156
  %v227 = vadd.f32 %v34, %v161
  %v228 = vadd.f32 %v35, %v166
  %v229 = vadd.f32 %v36, %v171
  %v230 = vadd.f32 %v37, %v176
  %v231 = vadd.f32 %v38, %v181
  %v232 = vadd.f32 %v39, %v186
  %v233 = vadd.f32 %v40, %v191
  %v234 = vadd.f32 %v41, %v196
  %v235 = vadd.f32 %v42, %v201
  %v236 = vadd.f32 %v43, %v206
  %v237 = vadd.f32 %v44, %v211
  %v238 = vadd.f32 %v45, %v216
  %v239 = vadd.f32 %v46, %v221
  %240 = vst [vmem:[#allocation2] sm:$0xff] %v224
  %241 = vst [vmem:[#allocation2 + $0x8] sm:$0xff] %v225
  %242 = vst [vmem:[#allocation2 + $0x10] sm:$0xff] %v226
  %243 = vst [vmem:[#allocation2 + $0x18] sm:$0xff] %v227
  %244 = vst [vmem:[#allocation2 + $0x20] sm:$0xff] %v228
  %245 = vst [vmem:[#allocation2 + $0x28] sm:$0xff] %v229
  %246 = vst [vmem:[#allocation2 + $0x30] sm:$0xff] %v230
  %247 = vst [vmem:[#allocation2 + $0x38] sm:$0xff] %v231
  %248 = vst [vmem:[#allocation2 + $0x40] sm:$0xff] %v232
  %249 = vst [vmem:[#allocation2 + $0x48] sm:$0xff] %v233
  %250 = vst [vmem:[#allocation2 + $0x50] sm:$0xff] %v234
  %251 = vst [vmem:[#allocation2 + $0x58] sm:$0xff] %v235
  %252 = vst [vmem:[#allocation2 + $0x60] sm:$0xff] %v236
  %253 = vst [vmem:[#allocation2 + $0x68] sm:$0xff] %v237
  %254 = vst [vmem:[#allocation2 + $0x70] sm:$0xff] %v238
  %255 = vst [vmem:[#allocation2 + $0x78] sm:$0xff] %v239
  // Predicated region
  $region14: #{graph_convolution.2} parent=0 // pred_check
    %p256 = pneg %p11
  $region15: #{graph_convolution.2} parent=0 // pred_check_branch
    %258 = sbr.rel (%p256) target = $region17
  $region16: #{graph_convolution.2} parent=0 // pred_region
    %v259 = vld [vmem:[#allocation2] sm:$0xff]
    %v260 = vld [vmem:[#allocation2 + $0x8] sm:$0xff]
    %v261 = vld [vmem:[#allocation2 + $0x10] sm:$0xff]
    %v262 = vld [vmem:[#allocation2 + $0x18] sm:$0xff]
    %v263 = vld [vmem:[#allocation2 + $0x20] sm:$0xff]
    %v264 = vld [vmem:[#allocation2 + $0x28] sm:$0xff]
    %v265 = vld [vmem:[#allocation2 + $0x30] sm:$0xff]
    %v266 = vld [vmem:[#allocation2 + $0x38] sm:$0xff]
    %v267 = vld [vmem:[#allocation2 + $0x40] sm:$0xff]
    %v268 = vld [vmem:[#allocation2 + $0x48] sm:$0xff]
    %v269 = vld [vmem:[#allocation2 + $0x50] sm:$0xff]
    %v270 = vld [vmem:[#allocation2 + $0x58] sm:$0xff]
    %v271 = vld [vmem:[#allocation2 + $0x60] sm:$0xff]
    %v272 = vld [vmem:[#allocation2 + $0x68] sm:$0xff]
    %v273 = vld [vmem:[#allocation2 + $0x70] sm:$0xff]
    %v274 = vld [vmem:[#allocation2 + $0x78] sm:$0xff]
    %275 = vst [vmem:[%s2] sm:$0xff] %v259
    %276 = vst [vmem:[%s2 + $0x8] sm:$0xff] %v260
    %277 = vst [vmem:[%s2 + $0x10] sm:$0xff] %v261
    %278 = vst [vmem:[%s2 + $0x18] sm:$0xff] %v262
    %279 = vst [vmem:[%s2 + $0x20] sm:$0xff] %v263
    %280 = vst [vmem:[%s2 + $0x28] sm:$0xff] %v264
    %281 = vst [vmem:[%s2 + $0x30] sm:$0xff] %v265
    %282 = vst [vmem:[%s2 + $0x38] sm:$0xff] %v266
    %283 = vst [vmem:[%s2 + $0x40] sm:$0xff] %v267
    %284 = vst [vmem:[%s2 + $0x48] sm:$0xff] %v268
    %285 = vst [vmem:[%s2 + $0x50] sm:$0xff] %v269
    %286 = vst [vmem:[%s2 + $0x58] sm:$0xff] %v270
    %287 = vst [vmem:[%s2 + $0x60] sm:$0xff] %v271
    %288 = vst [vmem:[%s2 + $0x68] sm:$0xff] %v272
    %289 = vst [vmem:[%s2 + $0x70] sm:$0xff] %v273
    %290 = vst [vmem:[%s2 + $0x78] sm:$0xff] %v274
  $region17: #{graph_convolution.2} parent=0 // pred_fallthru
    _
  // Predicated region
  $region18: #{graph_convolution.2} parent=0 // pred_check
    _
  $region19: #{graph_convolution.2} parent=0 // pred_check_branch
    %292 = sbr.rel (0) target = $region21
  $region20: #{graph_convolution.2} parent=0 // pred_region
    _
  $region21: #{graph_convolution.2} parent=0 // pred_fallthru
    _
  // Predicated region
  $region22: #{graph_convolution.2} parent=0 // pred_check
    _
  $region23: #{graph_convolution.2} parent=0 // pred_check_branch
    %294 = sbr.rel (0) target = $region25
  $region24: #{graph_convolution.2} parent=0 // pred_region
    _
  $region25: #{graph_convolution.2} parent=0 // pred_fallthru
    _

</llo_original>
